<compile_context>
chip_gen: v5e
topology: v5e:2x2
jax: 0.10.0
libtpu: 0.0.40
codegen_flags: <defaults>
</compile_context>

<pallas_src>
import jax
import jax.numpy as jnp
from jax.experimental import pallas as pl
from jax.experimental.pallas import tpu as pltpu


def _choose_lane_dim(elems_per_sample: int, feature_dim: int, cap: int = 512) -> int:
    """Largest multiple of 128 (<= cap) dividing the per-sample element count.

    Falls back to the original feature dim (a full-extent last block is always
    a legal BlockSpec, it just may use masked partial stores)."""
    best = 0
    n = 128
    limit = min(elems_per_sample, cap)
    while n <= limit:
        if elems_per_sample % n == 0:
            best = n
        n += 128
    return best if best > 0 else feature_dim


def _drop_path_kernel(scale_ref, x_ref, o_ref):
    # scale_ref: (B,) float32 in SMEM (scalar-prefetched per-sample scale)
    # x_ref / o_ref: (tile_r, N) activation tile of sample b = program_id(0)
    s = scale_ref[pl.program_id(0)].astype(x_ref.dtype)
    o_ref[...] = x_ref[...] * s


def _drop_path_apply(x3d, sample_scale, *, tile_r):
    """Per-sample scale of a (B, R, N) array, tiled over rows of each sample."""
    B, R, N = x3d.shape
    tiles = pl.cdiv(R, tile_r)
    itemsize = jnp.dtype(x3d.dtype).itemsize
    cost = pl.CostEstimate(
        flops=B * R * N,
        transcendentals=0,
        bytes_accessed=2 * B * R * N * itemsize + B * 4,
    )
    return pl.pallas_call(
        _drop_path_kernel,
        out_shape=jax.ShapeDtypeStruct((B, R, N), x3d.dtype),
        grid_spec=pltpu.PrefetchScalarGridSpec(
            num_scalar_prefetch=1,                     # sample_scale -> SMEM
            grid=(B, tiles),
            in_specs=[
                # batch dim squeezed out of the kernel view; ragged last row
                # block (when tile_r does not divide R) is masked by Pallas.
                pl.BlockSpec((None, tile_r, N), lambda b, t, scale: (b, t, 0)),
            ],
            out_specs=pl.BlockSpec((None, tile_r, N), lambda b, t, scale: (b, t, 0)),
        ),
        compiler_params=pltpu.CompilerParams(
            dimension_semantics=("parallel", "parallel")),  # no reduction axes
        cost_estimate=cost,
        # Alias activations to the output (indices count the scalar-prefetch
        # arg, so x3d is input 1).  Mainly saves an HBM allocation under jit.
        input_output_aliases={1: 0},
    )(sample_scale, x3d)


def donut_swin_drop_path(hidden_states, drop_prob=0.0, *, training=False, key=None,
                         tile_bytes=4 * 1024 * 1024):
    """Pallas TPU equivalent of DonutSwinDropPath.forward.

    hidden_states: batch as dim 0, features as last dim (Swin: (B, S, D)).
    drop_prob / training must be static Python values (as in the torch module).
    tile_bytes: target in+out HBM traffic per grid step (live VMEM ~ 2x this).
    """
    # Identity path: exact PyTorch semantics for eval / drop_prob == 0.
    if drop_prob == 0.0 or not training:
        return hidden_states
    if key is None:
        raise ValueError("training-mode drop_path requires a PRNG key")

    keep_prob = 1.0 - drop_prob
    B = hidden_states.shape[0]
    # Same recipe as torch: floor(keep_prob + U[0,1)) -> Bernoulli(keep_prob).
    u = jax.random.uniform(key, (B,), dtype=jnp.float32)
    keep = jnp.floor(keep_prob + u)                    # 0.0 or 1.0 per sample
    sample_scale = keep / keep_prob                    # (B,) f32

    orig_shape = hidden_states.shape
    dtype = hidden_states.dtype
    itemsize = jnp.dtype(dtype).itemsize
    E = hidden_states.size // B                        # elements per sample

    # Lane-dense per-sample layout: (B, R, N), N a multiple of 128 if possible.
    N = _choose_lane_dim(E, orig_shape[-1])
    R = E // N
    x3d = hidden_states.reshape(B, R, N)

    # Rows per grid step: sized by bytes, rounded to the dtype's sublane
    # packing, capped so the grid has >= ~4 steps total.
    sublane = max(8, 32 // itemsize)                   # 8 f32, 16 bf16, 32 int8
    rows_budget = max(1, tile_bytes // (2 * N * itemsize))
    tile_r = min(R, rows_budget)
    min_grid_steps = 4
    tiles_per_sample_wanted = pl.cdiv(min_grid_steps, B)
    if tiles_per_sample_wanted > 1:
        tile_r = min(tile_r, pl.cdiv(R, tiles_per_sample_wanted))
    if tile_r < R:
        tile_r = max(sublane, (tile_r // sublane) * sublane)
        tile_r = min(tile_r, R)

    out3d = _drop_path_apply(x3d, sample_scale, tile_r=tile_r)
    return out3d.reshape(orig_shape)


if __name__ == "__main__":
    key = jax.random.PRNGKey(0)
    k_x, k_drop, k_x2, k_drop2 = jax.random.split(key, 4)

    drop_prob = 0.25
    keep_prob = 1.0 - drop_prob

    # --- case 1: (batch, seq, dim) = (2, 8, 32); lane-dense reshape path ---
    batch, seq, dim = 2, 8, 32
    hidden_states = jax.random.normal(k_x, (batch, seq, dim), dtype=jnp.float32)

    # eval / identity path (matches PyTorch eval-mode forward)
    out_eval = donut_swin_drop_path(hidden_states, drop_prob, training=False)
    jax.block_until_ready(out_eval)
    assert jnp.allclose(out_eval, hidden_states)

    # training path: per-sample drop + rescale via the Pallas kernel
    out_train = donut_swin_drop_path(hidden_states, drop_prob,
                                     training=True, key=k_drop)
    jax.block_until_ready(out_train)

    u = jax.random.uniform(k_drop, (batch,), dtype=jnp.float32)
    keep = jnp.floor(keep_prob + u)
    ref = hidden_states * (keep / keep_prob)[:, None, None]
    assert out_train.shape == hidden_states.shape
    assert jnp.allclose(out_train, ref, atol=1e-6, rtol=1e-6)

    # --- case 2: Swin-like non-128-multiple feature width + ragged row tiles ---
    b2, s2, d2 = 3, 49, 96
    hs2 = jax.random.normal(k_x2, (b2, s2, d2), dtype=jnp.float32)
    out2 = donut_swin_drop_path(hs2, drop_prob, training=True, key=k_drop2)
    jax.block_until_ready(out2)

    u2 = jax.random.uniform(k_drop2, (b2,), dtype=jnp.float32)
    keep2 = jnp.floor(keep_prob + u2)
    ref2 = hs2 * (keep2 / keep_prob)[:, None, None]
    assert out2.shape == hs2.shape
    assert jnp.allclose(out2, ref2, atol=1e-6, rtol=1e-6)

    print("KERNEL_OK")
</pallas_src>

<mosaic_0001>
module attributes {stable_mosaic.version = 11 : i64} {
  func.func @_drop_path_kernel(%arg0: i32, %arg1: i32, %arg2: memref<2xf32, #tpu.memory_space<smem>>, %arg3: memref<1x1x256xf32, #tpu.memory_space<vmem>>, %arg4: memref<1x1x256xf32, #tpu.memory_space<vmem>>) attributes {dimension_semantics = [#tpu.dimension_semantics<parallel>, #tpu.dimension_semantics<parallel>], iteration_bounds = array<i64: 2, 1>, scalar_prefetch = 1 : i64, scratch_operands = 0 : i64, tpu.core_type = #tpu.core_type<tc>, window_params = [{transform_indices = @transform_0, window_bounds = array<i64: 1, 1, 256>}, {transform_indices = @transform_1, window_bounds = array<i64: 1, 1, 256>}]} {
    %0 = arith.index_cast %arg0 : i32 to index
    %1 = memref.load %arg2[%0] : memref<2xf32, #tpu.memory_space<smem>>
    %c0 = arith.constant 0 : index
    %c0_0 = arith.constant 0 : index
    %c0_1 = arith.constant 0 : index
    %2 = vector.load %arg3[%c0, %c0_0, %c0_1] : memref<1x1x256xf32, #tpu.memory_space<vmem>>, vector<1x1x256xf32>
    %3 = vector.shape_cast %2 : vector<1x1x256xf32> to vector<1x256xf32>
    %4 = vector.broadcast %1 : f32 to vector<1x256xf32>
    %5 = arith.mulf %3, %4 : vector<1x256xf32>
    %c0_2 = arith.constant 0 : index
    %c0_3 = arith.constant 0 : index
    %c0_4 = arith.constant 0 : index
    %6 = vector.load %arg4[%c0_2, %c0_3, %c0_4] : memref<1x1x256xf32, #tpu.memory_space<vmem>>, vector<1x1x256xf32>
    %7 = vector.shape_cast %6 : vector<1x1x256xf32> to vector<1x256xf32>
    %8 = vector.shape_cast %5 : vector<1x256xf32> to vector<1x1x256xf32>
    tpu.vector_store %arg4[%c0_2, %c0_3, %c0_4], %8 {strides = array<i32>} : memref<1x1x256xf32, #tpu.memory_space<vmem>>, vector<1x1x256xf32>,
    return
  }
  func.func @transform_0(%arg0: i32, %arg1: i32, %arg2: memref<2xf32, #tpu.memory_space<smem>>) -> (i32, i32, i32) {
    %c0_i32 = arith.constant 0 : i32
    %c0_i32_0 = arith.constant 0 : i32
    return %arg0, %arg1, %c0_i32 : i32, i32, i32
  }
  func.func @transform_1(%arg0: i32, %arg1: i32, %arg2: memref<2xf32, #tpu.memory_space<smem>>) -> (i32, i32, i32) {
    %c0_i32 = arith.constant 0 : i32
    %c0_i32_0 = arith.constant 0 : i32
    return %arg0, %arg1, %c0_i32 : i32, i32, i32
  }
}

</mosaic_0001>

<llo_original>
// kernel: tpu_custom_call.1
$region0: #{tpu_custom_call.1}
  #allocation0 [shape = 'u32[]', space=smem, size = 0x4, offset = 0x4, fixed_abs, tag = 'smem constant byte address 0x4 - core index']
  #allocation1 [shape = 'u32[72,128]{1,0:T(1,128)}', space=vmem, size = 0x9000, scoped, tag = 'internal scratch']
  #allocation2 [shape = 's32[1]{0}', space=sflag, size = 0x4, scoped, tag = 'scoped memory for tpu_custom_call.1']
  #allocation3 [shape = 'u8[512]{0}', space=smem, size = 0x200, scoped, tag = 'prefetched SMEM operand 0']
  %s0 = inlined_call_operand.vmem [shape: f32[2], index: 0, kind: input, shape index: {}]
  %s1 = inlined_call_operand.hbm [shape: f32[2,1,256], index: 1, kind: input, shape index: {}, may-alias: {1,2}]
  %s2 = inlined_call_operand.hbm [shape: f32[2,1,256], index: 2, kind: output, shape index: {}, may-alias: {1,2}]
  %s3 = sld [smem:[#allocation0]]
  $region41: #{tpu_custom_call.1} parent=0
    _
  %s5 = ssub.s32 1, %s3
  %s6 = scalar_select 0, %s5, %s3
  %s8 = sshll.u32 %s0, 4
  %s9 = int_to_ptr.vmem [resolvable:$true] %s8
  %11 = dma.vmem_to_smem %s9, 16, [#allocation3], [#allocation2]
  %13 = dma.done [#allocation2], 16
  %14 = sfence
  $region1: #{tpu_custom_call.1} parent=0
    #allocation4 [shape = 'u8[2048]{0}', space=vmem, size = 0x800, scoped, tag = 'input window, operand 1']
    #allocation5 [shape = 's32[2]{0}', space=sflag, size = 0x8, scoped, tag = 'scoped memory for tpu_custom_call.1']
    #allocation6 [shape = 's32[2]{0}', space=sflag, size = 0x8, scoped, tag = 'scoped memory for tpu_custom_call.1']
    #allocation7 [shape = 'u8[2048]{0}', space=vmem, size = 0x800, scoped, tag = 'output window, operand 0']
    %15 = vsyncpa [#allocation5], 0
    %s16 = scalar_lea.sflag [#allocation5], 1
    %17 = vsyncpa %s16, 0
    %18 = vsyncpa [#allocation6], 0
    %s19 = scalar_lea.sflag [#allocation6], 1
    %20 = vsyncpa %s19, 0
    loop: start=0, step=1, limit=4
    $region2: #{tpu_custom_call.1} parent=1 // loop_pre_header
      _
    $region3: #{tpu_custom_call.1} parent=1 // loop_header
      %s22 = sphi 0, %s26
      %p23 = scmp.ge.s32.totalorder %s22, 4
      %s29 = sphi 0, %s41
      %s30 = sphi 0, %s37
      %s31 = sphi 0, %s29
      %s32 = sphi 0, %s30
      %s33 = sphi 0, %s31
      %s34 = sphi 0, %s32
      %s46 = sphi 0, %s48
      %s49 = sphi 0, %s46
      %s50 = sphi 0, %s49
      %s66 = sphi 0, %s50
      %s74 = sphi 0, %s76
      %s77 = sphi 0, %s74
      %s78 = sphi 0, %s77
      %s94 = sphi 0, %s78
    $region4: #{tpu_custom_call.1} parent=1 // loop_header_branch
      %25 = sbr.rel (%p23) target = $region8
    $region5: #{tpu_custom_call.1} parent=1 // loop_body
      %s27 = ssub.s32 %s22, 1
      %s28 = ssub.s32 %s22, 2
      %s35 = sadd.s32 1, %s30
      %p36 = scmp.ge.s32.totalorder %s35, 1
      %s37 = scalar_select %p36, 0, %s35
      %s38 = sadd.s32 1, %s29
      %s39 = scalar_select %p36, %s38, %s29
      %p40 = scmp.ge.s32.totalorder %s39, 2
      %s41 = scalar_select %p40, 0, %s39
      %s42 = ssub.s32 %s29, %s41
      %s43 = ssub.s32 %s30, %s37
      %s44 = sor.u32 %s42, %s43
      %p45 = scmp.eq.s32.totalorder %s44, 0
      %s47 = sadd.s32 %s46, 1
      %s48 = scalar_select %p45, %s46, %s47
      %p51 = pneg %p45
      %p52 = scmp.eq.s32.totalorder %s22, 1
      %p53 = por %p51, %p52
      %p54 = scmp.ne.s32.totalorder %s46, %s49
      %p55 = scmp.eq.s32.totalorder %s22, 0
      %p56 = por %p54, %p55
      %p57 = scmp.ne.s32.totalorder %s46, %s49
      %p58 = scmp.eq.s32.totalorder %s27, 1
      %p59 = por %p57, %p58
      %p60 = scmp.ne.s32.totalorder %s49, %s50
      %p61 = scmp.eq.s32.totalorder %s27, 0
      %p62 = por %p60, %p61
      %p63 = scmp.ne.s32.totalorder %s49, %s50
      %p64 = scmp.eq.s32.totalorder %s28, 1
      %p65 = por %p63, %p64
      %p67 = scmp.ne.s32.totalorder %s50, %s66
      %p68 = scmp.eq.s32.totalorder %s28, 0
      %p69 = por %p67, %p68
      %s70 = ssub.s32 %s29, %s41
      %s71 = ssub.s32 %s30, %s37
      %s72 = sor.u32 %s70, %s71
      %p73 = scmp.eq.s32.totalorder %s72, 0
      %s75 = sadd.s32 %s74, 1
      %s76 = scalar_select %p73, %s74, %s75
      %p79 = pneg %p73
      %p80 = scmp.eq.s32.totalorder %s22, 1
      %p81 = por %p79, %p80
      %p82 = scmp.ne.s32.totalorder %s74, %s77
      %p83 = scmp.eq.s32.totalorder %s22, 0
      %p84 = por %p82, %p83
      %p85 = scmp.ne.s32.totalorder %s74, %s77
      %p86 = scmp.eq.s32.totalorder %s27, 1
      %p87 = por %p85, %p86
      %p88 = scmp.ne.s32.totalorder %s77, %s78
      %p89 = scmp.eq.s32.totalorder %s27, 0
      %p90 = por %p88, %p89
      %p91 = scmp.ne.s32.totalorder %s77, %s78
      %p92 = scmp.eq.s32.totalorder %s28, 1
      %p93 = por %p91, %p92
      %p95 = scmp.ne.s32.totalorder %s78, %s94
      %p96 = scmp.eq.s32.totalorder %s28, 0
      %p97 = por %p95, %p96
      %p98 = scmp.le.s32.totalorder 1, %s22
      %p99 = scmp.lt.s32.totalorder %s22, 3
      %p100 = pnand %p98, %p99
      %p101 = pneg %p100
      // Predicated region
      $region9: #{tpu_custom_call.1} parent=5 // pred_check
        _
      $region10: #{tpu_custom_call.1} parent=5 // pred_check_branch
        %103 = sbr.rel (%p100) target = $region12
      $region11: #{tpu_custom_call.1} parent=5 // pred_region
        %s104 = ssub.s32 %s22, 1
      $region12: #{tpu_custom_call.1} parent=5 // pred_fallthru
        _
      %p105 = scmp.lt.s32.totalorder %s22, 2
      // Predicated region
      $region13: #{tpu_custom_call.1} parent=5 // pred_check
        %p106 = pneg %p105
      $region14: #{tpu_custom_call.1} parent=5 // pred_check_branch
        %108 = sbr.rel (%p106) target = $region16
      $region15: #{tpu_custom_call.1} parent=5 // pred_region
        // Predicated region
        $region17: #{tpu_custom_call.1} parent=15 // pred_check
          %p109 = pneg %p56
        $region18: #{tpu_custom_call.1} parent=15 // pred_check_branch
          %111 = sbr.rel (%p109) target = $region20
        $region19: #{tpu_custom_call.1} parent=15 // pred_region
          %s112 = sand.u32 %s46, 1
          %s113 = scalar_lea.sflag [#allocation5], %s112
          %s114 = sand.u32 %s46, 1
          %s115 = smul.addr %s114, 2
          %s116 = scalar_lea.vmem [#allocation4], %s115
          %118 = vsyncadd %s113, 0
          %s119 = smul.addr %s30, 2
          %s120 = smul.addr %s29, 2
          %s121 = sadd.s32 %s119, %s120
          %s122 = scalar_lea.hbm %s1, %s121
          %s124 = sshll.u32 %s122, 4
          %s125 = int_to_ptr.hbm [resolvable:$true] %s124
          %s126 = sshll.u32 %s116, 4
          %s127 = int_to_ptr.vmem [resolvable:$true] %s126
          %129 = dma.hbm_to_vmem [thread:$0]  %s125, 32, %s127, %s113
        $region20: #{tpu_custom_call.1} parent=15 // pred_fallthru
          _
      $region16: #{tpu_custom_call.1} parent=5 // pred_fallthru
        _
      %p130 = scmp.le.s32.totalorder 1, %s22
      %p131 = scmp.lt.s32.totalorder %s22, 3
      %p132 = pnand %p130, %p131
      %p133 = pneg %p132
      // Predicated region
      $region21: #{tpu_custom_call.1} parent=5 // pred_check
        _
      $region22: #{tpu_custom_call.1} parent=5 // pred_check_branch
        %135 = sbr.rel (%p132) target = $region24
      $region23: #{tpu_custom_call.1} parent=5 // pred_region
        %s136 = ssub.s32 %s22, 1
        %s137 = sand.u32 %s49, 1
        %s138 = scalar_lea.sflag [#allocation5], %s137
        %s139 = sand.u32 %s49, 1
        %s140 = smul.addr %s139, 2
        %s141 = scalar_lea.vmem [#allocation4], %s140
        // Predicated region
        $region25: #{tpu_custom_call.1} parent=23 // pred_check
          %p142 = pneg %p62
        $region26: #{tpu_custom_call.1} parent=23 // pred_check_branch
          %144 = sbr.rel (%p142) target = $region28
        $region27: #{tpu_custom_call.1} parent=23 // pred_region
          %146 = dma.done %s138, 32
        $region28: #{tpu_custom_call.1} parent=23 // pred_fallthru
          _
        %s147 = sand.u32 %s49, 1
        %s148 = scalar_lea.sflag [#allocation5], %s147
        %s149 = sand.u32 %s49, 1
        %s150 = smul.addr %s149, 2
        %s151 = scalar_lea.vmem [#allocation4], %s150
        %p152 = pneg %p62
        %p153 = pneg %p59
        %p154 = pneg %p90
        %p155 = pneg %p87
        %s156 = sand.u32 %s77, 1
        %s157 = scalar_lea.sflag [#allocation6], %s156
        %s158 = sand.u32 %s77, 1
        %s159 = smul.addr %s158, 2
        %s160 = scalar_lea.vmem [#allocation7], %s159
        %s161 = sld [smem:[#allocation3 + %s31]]
        %v162 = vld [vmem:[%s141] sm:$0x3]
        %v163 = vstv %s161
        %v164 = vmul.f32 %v162, %v163
        %v165 = vlaneseq
        %vm166 = vcmp.ge.s32.totalorder %v165, 0
        %vm167 = vcmp.lt.s32.totalorder %v165, 256
        %vm168 = vmand %vm166, %vm167
        %169 = vst.msk [vmem:[%s160] sm:$0x3] %vm168, %v164
        %s170 = sand.u32 %s77, 1
        %s171 = scalar_lea.sflag [#allocation6], %s170
        %s172 = sand.u32 %s77, 1
        %s173 = smul.addr %s172, 2
        %s174 = scalar_lea.vmem [#allocation7], %s173
        // Predicated region
        $region29: #{tpu_custom_call.1} parent=23 // pred_check
          %p175 = pneg %p87
        $region30: #{tpu_custom_call.1} parent=23 // pred_check_branch
          %177 = sbr.rel (%p175) target = $region32
        $region31: #{tpu_custom_call.1} parent=23 // pred_region
          %179 = vsyncadd %s171, 0
          %s180 = smul.addr %s32, 2
          %s181 = smul.addr %s31, 2
          %s182 = sadd.s32 %s180, %s181
          %s183 = scalar_lea.hbm %s2, %s182
          %s185 = sshll.u32 %s174, 4
          %s186 = int_to_ptr.vmem [resolvable:$true] %s185
          %s187 = sshll.u32 %s183, 4
          %s188 = int_to_ptr.hbm [resolvable:$true] %s187
          %190 = dma.vmem_to_hbm [thread:$0]  %s186, 32, %s188, %s171
        $region32: #{tpu_custom_call.1} parent=23 // pred_fallthru
          _
      $region24: #{tpu_custom_call.1} parent=5 // pred_fallthru
        _
      %p191 = scmp.le.s32.totalorder 2, %s22
      // Predicated region
      $region33: #{tpu_custom_call.1} parent=5 // pred_check
        %p192 = pneg %p191
      $region34: #{tpu_custom_call.1} parent=5 // pred_check_branch
        %194 = sbr.rel (%p192) target = $region36
      $region35: #{tpu_custom_call.1} parent=5 // pred_region
        %s195 = ssub.s32 %s22, 2
        // Predicated region
        $region37: #{tpu_custom_call.1} parent=35 // pred_check
          %p196 = pneg %p93
        $region38: #{tpu_custom_call.1} parent=35 // pred_check_branch
          %198 = sbr.rel (%p196) target = $region40
        $region39: #{tpu_custom_call.1} parent=35 // pred_region
          %s199 = sand.u32 %s78, 1
          %s200 = scalar_lea.sflag [#allocation6], %s199
          %s201 = sand.u32 %s78, 1
          %s202 = smul.addr %s201, 2
          %s203 = scalar_lea.vmem [#allocation7], %s202
          %205 = dma.done %s200, 32
        $region40: #{tpu_custom_call.1} parent=35 // pred_fallthru
          _
      $region36: #{tpu_custom_call.1} parent=5 // pred_fallthru
        _
    $region6: #{tpu_custom_call.1} parent=1 // loop_footer
      %s26 = sadd.s32 1, %s22
    $region7: #{tpu_custom_call.1} parent=1 // loop_footer_branch
      %21 = sbr.rel target = $region3
    $region8: #{tpu_custom_call.1} parent=1 // loop_exit
      _
    %206 = vsyncpa [#allocation5], 1
    %s207 = scalar_lea.sflag [#allocation5], 1
    %208 = vsyncpa %s207, 1
    %209 = vsyncpa [#allocation6], 1
    %s210 = scalar_lea.sflag [#allocation6], 1
    %211 = vsyncpa %s210, 1

</llo_original>
